<compile_context>
chip_gen: v7x
topology: tpu7x:2x2x1
jax: 0.10.0
libtpu: 0.0.40
codegen_flags: <defaults>
</compile_context>

<pallas_src>
import math

import jax
import jax.numpy as jnp
from jax.experimental import pallas as pl
from jax.experimental.pallas import tpu as pltpu


def _round_up(x, m):
    return ((x + m - 1) // m) * m


def encoder_kernel(x_ref,
                   w1_ref, b1_ref,
                   w2_ref, b2_ref,
                   w3_ref, b3_ref,
                   w4_ref, b4_ref,
                   o_ref):
    """Fused 4x (matmul + bias + ReLU) on one (TM, F) batch tile.

    x arrives as f32 and is cast to the MXU operand dtype in-kernel (VPU);
    accumulation, bias add and ReLU are f32; result stored in o_ref.dtype.
    """
    cdt = w1_ref.dtype  # MXU operand dtype (bf16 or f32)

    h = x_ref[...].astype(cdt)  # in-kernel cast: no extra HBM pass in the wrapper
    h = jnp.maximum(
        jnp.dot(h, w1_ref[...], preferred_element_type=jnp.float32) + b1_ref[...], 0.0)
    h = jnp.maximum(
        jnp.dot(h.astype(cdt), w2_ref[...], preferred_element_type=jnp.float32) + b2_ref[...], 0.0)
    h = jnp.maximum(
        jnp.dot(h.astype(cdt), w3_ref[...], preferred_element_type=jnp.float32) + b3_ref[...], 0.0)
    h = jnp.maximum(
        jnp.dot(h.astype(cdt), w4_ref[...], preferred_element_type=jnp.float32) + b4_ref[...], 0.0)

    o_ref[...] = h.astype(o_ref.dtype)


def _choose_batch_tile(B, tm_max, *, min_rows_per_step=16, min_steps=2):
    """Pick (TM, Bp): TM multiple of 16, padding bounded by <16 rows per tile,
    and >= min_steps grid steps when the batch is large enough (so the
    'parallel' batch axis can split across v7x's two TensorCores)."""
    n_tiles = max(1, pl.cdiv(B, tm_max))
    if B >= min_steps * min_rows_per_step:
        n_tiles = max(n_tiles, min_steps)
    TM = _round_up(pl.cdiv(B, n_tiles), min_rows_per_step)
    Bp = _round_up(B, TM)
    return TM, Bp


def encoder_forward(x, params, *, tm_max=2048, use_bf16=True):
    """x: (B, F) float32.  params: w1..w4 stored as (in, out), b1..b4 as (1, out)."""
    B, F = x.shape
    dims = [(F, F // 2), (F // 2, F // 4), (F // 4, F // 2), (F // 2, F)]

    TM, Bp = _choose_batch_tile(B, tm_max)
    if Bp != B:
        x = jnp.pad(x, ((0, Bp - B), (0, 0)))

    op_dtype = jnp.bfloat16 if use_bf16 else jnp.float32
    # x stays f32; only the (tiny) weights are pre-cast for the MXU.
    ws = [params[f"w{i}"].astype(op_dtype) for i in range(1, 5)]
    bs = [params[f"b{i}"].astype(jnp.float32) for i in range(1, 5)]

    grid = (Bp // TM,)

    # x / y: one (TM, F) block per grid step.
    x_spec = pl.BlockSpec((TM, F), lambda i: (i, 0))
    out_spec = pl.BlockSpec((TM, F), lambda i: (i, 0))

    # Weights / biases: full-array blocks, same block index every step ->
    # VMEM-resident for the whole grid (no re-DMA in steady state).
    def resident(arr):
        return pl.BlockSpec(arr.shape, lambda i: (0, 0))

    in_specs = [x_spec]
    operands = [x]
    for w, b in zip(ws, bs):
        in_specs += [resident(w), resident(b)]
        operands += [w, b]

    # Scheduling hint for XLA around this memory-bound custom call.
    w_item = 2 if use_bf16 else 4
    flops = 2 * Bp * sum(din * dout for din, dout in dims)
    bytes_accessed = (Bp * F * 4                  # x read (f32, cast in-kernel)
                      + Bp * F * 4                # y write (f32)
                      + sum(din * dout * w_item + dout * 4 for din, dout in dims))

    y = pl.pallas_call(
        encoder_kernel,
        out_shape=jax.ShapeDtypeStruct((Bp, F), jnp.float32),
        grid=grid,
        in_specs=in_specs,
        out_specs=out_spec,
        compiler_params=pltpu.CompilerParams(
            dimension_semantics=("parallel",)),   # shards batch grid on v7x's 2 TCs
        cost_estimate=pl.CostEstimate(
            flops=flops, transcendentals=0, bytes_accessed=bytes_accessed),
    )(*operands)

    return y[:B] if Bp != B else y


def init_params(key, input_feature):
    """Deterministic init mimicking torch.nn.Linear default (uniform +/- 1/sqrt(fan_in))."""
    dims = [
        (input_feature, input_feature // 2),       # L1
        (input_feature // 2, input_feature // 4),  # L2
        (input_feature // 4, input_feature // 2),  # L3
        (input_feature // 2, input_feature),       # L4
    ]
    params = {}
    keys = jax.random.split(key, 2 * len(dims))
    for i, (fan_in, fan_out) in enumerate(dims):
        bound = 1.0 / math.sqrt(fan_in)
        # stored already transposed: (in, out) == torch Linear.weight.T
        params[f"w{i+1}"] = jax.random.uniform(
            keys[2 * i], (fan_in, fan_out), jnp.float32, -bound, bound)
        params[f"b{i+1}"] = jax.random.uniform(
            keys[2 * i + 1], (1, fan_out), jnp.float32, -bound, bound)
    return params


def encoder_ref(x, params, *, use_bf16=True):
    """Plain-JAX reference.  use_bf16=True mirrors the kernel's dtype choices;
    use_bf16=False is the pure-f32 PyTorch-module semantics."""
    cdt = jnp.bfloat16 if use_bf16 else jnp.float32
    h = x.astype(cdt)
    for i in range(1, 5):
        w = params[f"w{i}"].astype(cdt)
        b = params[f"b{i}"].astype(jnp.float32)
        h = jnp.maximum(
            jnp.dot(h, w, preferred_element_type=jnp.float32) + b, 0.0)
        if i < 4:
            h = h.astype(cdt)
    return h


if __name__ == "__main__":
    # Shapes consistent with the module: dof is fixed to 7 in __init__.
    horizon, dof_num, dof = 4, 2, 7
    input_feature = horizon * dof_num * dof  # 56
    batch_size = 8

    key = jax.random.PRNGKey(0)
    kx, kp, kx2 = jax.random.split(key, 3)
    params = init_params(kp, input_feature)

    # Case 1: tiny batch -> single grid step, TM snapped to 16, 8 pad rows.
    x = jax.random.normal(kx, (batch_size, input_feature), jnp.float32)
    out = jax.block_until_ready(encoder_forward(x, params))
    assert out.shape == (batch_size, input_feature)
    # vs a reference mirroring the kernel's bf16-MXU / f32-accum choices (tight)
    ref_mirror = encoder_ref(x, params, use_bf16=True)
    assert jnp.allclose(out, ref_mirror, atol=1e-2, rtol=1e-2), "mismatch vs mirrored ref (case 1)"
    # vs the pure-f32 module semantics (loose: bf16 operands are a design choice)
    ref_f32 = encoder_ref(x, params, use_bf16=False)
    assert jnp.allclose(out, ref_f32, atol=5e-2, rtol=5e-2), "mismatch vs f32 ref (case 1)"

    # Case 2: batch not a multiple of 16 and larger than the tile cap ->
    # exercises bounded padding + a multi-step pipelined grid (>=2 steps)
    # with VMEM-resident weights.
    x2 = jax.random.normal(kx2, (40, input_feature), jnp.float32)
    out2 = jax.block_until_ready(encoder_forward(x2, params, tm_max=16))
    assert out2.shape == (40, input_feature)
    ref2_mirror = encoder_ref(x2, params, use_bf16=True)
    assert jnp.allclose(out2, ref2_mirror, atol=1e-2, rtol=1e-2), "mismatch vs mirrored ref (case 2)"
    ref2_f32 = encoder_ref(x2, params, use_bf16=False)
    assert jnp.allclose(out2, ref2_f32, atol=5e-2, rtol=5e-2), "mismatch vs f32 ref (case 2)"

    print("KERNEL_OK")
</pallas_src>

<mosaic_0001>
module attributes {stable_mosaic.version = 11 : i64} {
  func.func @encoder_kernel(%arg0: i32, %arg1: memref<16x56xf32, #tpu.memory_space<vmem>>, %arg2: memref<56x28xbf16, #tpu.memory_space<vmem>>, %arg3: memref<1x28xf32, #tpu.memory_space<vmem>>, %arg4: memref<28x14xbf16, #tpu.memory_space<vmem>>, %arg5: memref<1x14xf32, #tpu.memory_space<vmem>>, %arg6: memref<14x28xbf16, #tpu.memory_space<vmem>>, %arg7: memref<1x28xf32, #tpu.memory_space<vmem>>, %arg8: memref<28x56xbf16, #tpu.memory_space<vmem>>, %arg9: memref<1x56xf32, #tpu.memory_space<vmem>>, %arg10: memref<16x56xf32, #tpu.memory_space<vmem>>) attributes {dimension_semantics = [#tpu.dimension_semantics<parallel>], iteration_bounds = array<i64: 1>, scalar_prefetch = 0 : i64, scratch_operands = 0 : i64, tpu.core_type = #tpu.core_type<tc>, window_params = [{transform_indices = @transform_0, window_bounds = array<i64: 16, 56>}, {pipeline_mode = #tpu.pipeline_mode<synchronous>, transform_indices = @transform_1, window_bounds = array<i64: 56, 28>}, {pipeline_mode = #tpu.pipeline_mode<synchronous>, transform_indices = @transform_2, window_bounds = array<i64: 1, 28>}, {pipeline_mode = #tpu.pipeline_mode<synchronous>, transform_indices = @transform_3, window_bounds = array<i64: 28, 14>}, {pipeline_mode = #tpu.pipeline_mode<synchronous>, transform_indices = @transform_4, window_bounds = array<i64: 1, 14>}, {pipeline_mode = #tpu.pipeline_mode<synchronous>, transform_indices = @transform_5, window_bounds = array<i64: 14, 28>}, {pipeline_mode = #tpu.pipeline_mode<synchronous>, transform_indices = @transform_6, window_bounds = array<i64: 1, 28>}, {pipeline_mode = #tpu.pipeline_mode<synchronous>, transform_indices = @transform_7, window_bounds = array<i64: 28, 56>}, {pipeline_mode = #tpu.pipeline_mode<synchronous>, transform_indices = @transform_8, window_bounds = array<i64: 1, 56>}, {transform_indices = @transform_9, window_bounds = array<i64: 16, 56>}]} {
    %c0 = arith.constant 0 : index
    %c0_0 = arith.constant 0 : index
    %0 = vector.load %arg1[%c0, %c0_0] : memref<16x56xf32, #tpu.memory_space<vmem>>, vector<16x56xf32>
    %1 = arith.truncf %0 : vector<16x56xf32> to vector<16x56xbf16>
    %c0_1 = arith.constant 0 : index
    %c0_2 = arith.constant 0 : index
    %2 = vector.load %arg2[%c0_1, %c0_2] : memref<56x28xbf16, #tpu.memory_space<vmem>>, vector<56x28xbf16>
    %cst = arith.constant dense<0.000000e+00> : vector<16x28xf32>
    %3 = tpu.matmul %1, %2, %cst {dimension_numbers = #tpu.dot_dimension_numbers<[1], [0], [0], [1], [0, 0, 1, 1], [], []>} : vector<16x56xbf16>, vector<56x28xbf16>, vector<16x28xf32> -> vector<16x28xf32>
    %c0_3 = arith.constant 0 : index
    %c0_4 = arith.constant 0 : index
    %4 = vector.load %arg3[%c0_3, %c0_4] : memref<1x28xf32, #tpu.memory_space<vmem>>, vector<1x28xf32>
    %5 = vector.broadcast %4 : vector<1x28xf32> to vector<16x28xf32>
    %6 = arith.addf %3, %5 : vector<16x28xf32>
    %cst_5 = arith.constant 0.000000e+00 : f32
    %7 = vector.broadcast %cst_5 : f32 to vector<16x28xf32>
    %8 = arith.maximumf %6, %7 : vector<16x28xf32>
    %9 = arith.truncf %8 : vector<16x28xf32> to vector<16x28xbf16>
    %c0_6 = arith.constant 0 : index
    %c0_7 = arith.constant 0 : index
    %10 = vector.load %arg4[%c0_6, %c0_7] : memref<28x14xbf16, #tpu.memory_space<vmem>>, vector<28x14xbf16>
    %cst_8 = arith.constant dense<0.000000e+00> : vector<16x14xf32>
    %11 = tpu.matmul %9, %10, %cst_8 {dimension_numbers = #tpu.dot_dimension_numbers<[1], [0], [0], [1], [0, 0, 1, 1], [], []>} : vector<16x28xbf16>, vector<28x14xbf16>, vector<16x14xf32> -> vector<16x14xf32>
    %c0_9 = arith.constant 0 : index
    %c0_10 = arith.constant 0 : index
    %12 = vector.load %arg5[%c0_9, %c0_10] : memref<1x14xf32, #tpu.memory_space<vmem>>, vector<1x14xf32>
    %13 = vector.broadcast %12 : vector<1x14xf32> to vector<16x14xf32>
    %14 = arith.addf %11, %13 : vector<16x14xf32>
    %cst_11 = arith.constant 0.000000e+00 : f32
    %15 = vector.broadcast %cst_11 : f32 to vector<16x14xf32>
    %16 = arith.maximumf %14, %15 : vector<16x14xf32>
    %17 = arith.truncf %16 : vector<16x14xf32> to vector<16x14xbf16>
    %c0_12 = arith.constant 0 : index
    %c0_13 = arith.constant 0 : index
    %18 = vector.load %arg6[%c0_12, %c0_13] : memref<14x28xbf16, #tpu.memory_space<vmem>>, vector<14x28xbf16>
    %cst_14 = arith.constant dense<0.000000e+00> : vector<16x28xf32>
    %19 = tpu.matmul %17, %18, %cst_14 {dimension_numbers = #tpu.dot_dimension_numbers<[1], [0], [0], [1], [0, 0, 1, 1], [], []>} : vector<16x14xbf16>, vector<14x28xbf16>, vector<16x28xf32> -> vector<16x28xf32>
    %c0_15 = arith.constant 0 : index
    %c0_16 = arith.constant 0 : index
    %20 = vector.load %arg7[%c0_15, %c0_16] : memref<1x28xf32, #tpu.memory_space<vmem>>, vector<1x28xf32>
    %21 = vector.broadcast %20 : vector<1x28xf32> to vector<16x28xf32>
    %22 = arith.addf %19, %21 : vector<16x28xf32>
    %cst_17 = arith.constant 0.000000e+00 : f32
    %23 = vector.broadcast %cst_17 : f32 to vector<16x28xf32>
    %24 = arith.maximumf %22, %23 : vector<16x28xf32>
    %25 = arith.truncf %24 : vector<16x28xf32> to vector<16x28xbf16>
    %c0_18 = arith.constant 0 : index
    %c0_19 = arith.constant 0 : index
    %26 = vector.load %arg8[%c0_18, %c0_19] : memref<28x56xbf16, #tpu.memory_space<vmem>>, vector<28x56xbf16>
    %cst_20 = arith.constant dense<0.000000e+00> : vector<16x56xf32>
    %27 = tpu.matmul %25, %26, %cst_20 {dimension_numbers = #tpu.dot_dimension_numbers<[1], [0], [0], [1], [0, 0, 1, 1], [], []>} : vector<16x28xbf16>, vector<28x56xbf16>, vector<16x56xf32> -> vector<16x56xf32>
    %c0_21 = arith.constant 0 : index
    %c0_22 = arith.constant 0 : index
    %28 = vector.load %arg9[%c0_21, %c0_22] : memref<1x56xf32, #tpu.memory_space<vmem>>, vector<1x56xf32>
    %29 = vector.broadcast %28 : vector<1x56xf32> to vector<16x56xf32>
    %30 = arith.addf %27, %29 : vector<16x56xf32>
    %cst_23 = arith.constant 0.000000e+00 : f32
    %31 = vector.broadcast %cst_23 : f32 to vector<16x56xf32>
    %32 = arith.maximumf %30, %31 : vector<16x56xf32>
    %c0_24 = arith.constant 0 : index
    %c0_25 = arith.constant 0 : index
    %33 = vector.load %arg10[%c0_24, %c0_25] : memref<16x56xf32, #tpu.memory_space<vmem>>, vector<16x56xf32>
    tpu.vector_store %arg10[%c0_24, %c0_25], %32 {strides = array<i32>} : memref<16x56xf32, #tpu.memory_space<vmem>>, vector<16x56xf32>,
    return
  }
  func.func @transform_0(%arg0: i32) -> (i32, i32) {
    %c0_i32 = arith.constant 0 : i32
    %c0_i32_0 = arith.constant 0 : i32
    return %arg0, %c0_i32 : i32, i32
  }
  func.func @transform_1(%arg0: i32) -> (i32, i32) {
    %c0_i32 = arith.constant 0 : i32
    %c0_i32_0 = arith.constant 0 : i32
    %c0_i32_1 = arith.constant 0 : i32
    return %c0_i32, %c0_i32_0 : i32, i32
  }
  func.func @transform_2(%arg0: i32) -> (i32, i32) {
    %c0_i32 = arith.constant 0 : i32
    %c0_i32_0 = arith.constant 0 : i32
    %c0_i32_1 = arith.constant 0 : i32
    return %c0_i32, %c0_i32_0 : i32, i32
  }
  func.func @transform_3(%arg0: i32) -> (i32, i32) {
    %c0_i32 = arith.constant 0 : i32
    %c0_i32_0 = arith.constant 0 : i32
    %c0_i32_1 = arith.constant 0 : i32
    return %c0_i32, %c0_i32_0 : i32, i32
  }
  func.func @transform_4(%arg0: i32) -> (i32, i32) {
    %c0_i32 = arith.constant 0 : i32
    %c0_i32_0 = arith.constant 0 : i32
    %c0_i32_1 = arith.constant 0 : i32
    return %c0_i32, %c0_i32_0 : i32, i32
  }
  func.func @transform_5(%arg0: i32) -> (i32, i32) {
    %c0_i32 = arith.constant 0 : i32
    %c0_i32_0 = arith.constant 0 : i32
    %c0_i32_1 = arith.constant 0 : i32
    return %c0_i32, %c0_i32_0 : i32, i32
  }
  func.func @transform_6(%arg0: i32) -> (i32, i32) {
    %c0_i32 = arith.constant 0 : i32
    %c0_i32_0 = arith.constant 0 : i32
    %c0_i32_1 = arith.constant 0 : i32
    return %c0_i32, %c0_i32_0 : i32, i32
  }
  func.func @transform_7(%arg0: i32) -> (i32, i32) {
    %c0_i32 = arith.constant 0 : i32
    %c0_i32_0 = arith.constant 0 : i32
    %c0_i32_1 = arith.constant 0 : i32
    return %c0_i32, %c0_i32_0 : i32, i32
  }
  func.func @transform_8(%arg0: i32) -> (i32, i32) {
    %c0_i32 = arith.constant 0 : i32
    %c0_i32_0 = arith.constant 0 : i32
    %c0_i32_1 = arith.constant 0 : i32
    return %c0_i32, %c0_i32_0 : i32, i32
  }
  func.func @transform_9(%arg0: i32) -> (i32, i32) {
    %c0_i32 = arith.constant 0 : i32
    %c0_i32_0 = arith.constant 0 : i32
    return %arg0, %c0_i32 : i32, i32
  }
}

</mosaic_0001>

<llo_original>
// kernel: tpu_custom_call.1
$region0: #{tpu_custom_call.1}
  #allocation0 [shape = 'u32[]', space=smem, size = 0x4, offset = 0x4, fixed_abs, tag = 'smem constant byte address 0x4 - core index']
  #allocation1 [shape = 'u32[144,128]{1,0:T(1,128)}', space=vmem, size = 0x12000, scoped, tag = 'internal scratch']
  %s0 = inlined_call_operand.vmem [shape: f32[16,56], index: 0, kind: input, shape index: {}]
  %s1 = inlined_call_operand.vmem [shape: bf16[56,28], index: 1, kind: input, shape index: {}]
  %s2 = inlined_call_operand.vmem [shape: f32[1,28], index: 2, kind: input, shape index: {}]
  %s3 = inlined_call_operand.vmem [shape: bf16[28,14], index: 3, kind: input, shape index: {}]
  %s4 = inlined_call_operand.vmem [shape: f32[1,14], index: 4, kind: input, shape index: {}]
  %s5 = inlined_call_operand.vmem [shape: bf16[14,28], index: 5, kind: input, shape index: {}]
  %s6 = inlined_call_operand.vmem [shape: f32[1,28], index: 6, kind: input, shape index: {}]
  %s7 = inlined_call_operand.vmem [shape: bf16[28,56], index: 7, kind: input, shape index: {}]
  %s8 = inlined_call_operand.vmem [shape: f32[1,56], index: 8, kind: input, shape index: {}]
  %s9 = inlined_call_operand.hbm [shape: f32[16,56], index: 9, kind: output, shape index: {}]
  %s10 = sld [smem:[#allocation0]]
  $region46: #{tpu_custom_call.1} parent=0
    _
  %s12 = ssub.s32 1, %s10
  %s13 = scalar_select 0, %s12, %s10
  $region1: #{tpu_custom_call.1} parent=0
    #allocation2 [shape = 'u8[8192]{0}', space=vmem, size = 0x2000, scoped, tag = 'output window, operand 0, single buffered']
    #allocation3 [shape = 's32[1]{0}', space=sflag, size = 0x4, scoped, tag = 'scoped memory for tpu_custom_call.1']
    %14 = vsyncpa [#allocation3], 0
    // Predicated region
    $region2: #{tpu_custom_call.1} parent=1 // pred_check
      _
    $region3: #{tpu_custom_call.1} parent=1 // pred_check_branch
      %16 = sbr.rel (0) target = $region5
    $region4: #{tpu_custom_call.1} parent=1 // pred_region
      _
    $region5: #{tpu_custom_call.1} parent=1 // pred_fallthru
      _
    // Predicated region
    $region6: #{tpu_custom_call.1} parent=1 // pred_check
      _
    $region7: #{tpu_custom_call.1} parent=1 // pred_check_branch
      %18 = sbr.rel (0) target = $region9
    $region8: #{tpu_custom_call.1} parent=1 // pred_region
      _
    $region9: #{tpu_custom_call.1} parent=1 // pred_fallthru
      _
    // Predicated region
    $region10: #{tpu_custom_call.1} parent=1 // pred_check
      _
    $region11: #{tpu_custom_call.1} parent=1 // pred_check_branch
      %20 = sbr.rel (0) target = $region13
    $region12: #{tpu_custom_call.1} parent=1 // pred_region
      _
    $region13: #{tpu_custom_call.1} parent=1 // pred_fallthru
      _
    // Predicated region
    $region14: #{tpu_custom_call.1} parent=1 // pred_check
      _
    $region15: #{tpu_custom_call.1} parent=1 // pred_check_branch
      %22 = sbr.rel (0) target = $region17
    $region16: #{tpu_custom_call.1} parent=1 // pred_region
      _
    $region17: #{tpu_custom_call.1} parent=1 // pred_fallthru
      _
    // Predicated region
    $region18: #{tpu_custom_call.1} parent=1 // pred_check
      _
    $region19: #{tpu_custom_call.1} parent=1 // pred_check_branch
      %24 = sbr.rel (0) target = $region21
    $region20: #{tpu_custom_call.1} parent=1 // pred_region
      _
    $region21: #{tpu_custom_call.1} parent=1 // pred_fallthru
      _
    // Predicated region
    $region22: #{tpu_custom_call.1} parent=1 // pred_check
      _
    $region23: #{tpu_custom_call.1} parent=1 // pred_check_branch
      %26 = sbr.rel (0) target = $region25
    $region24: #{tpu_custom_call.1} parent=1 // pred_region
      _
    $region25: #{tpu_custom_call.1} parent=1 // pred_fallthru
      _
    // Predicated region
    $region26: #{tpu_custom_call.1} parent=1 // pred_check
      _
    $region27: #{tpu_custom_call.1} parent=1 // pred_check_branch
      %28 = sbr.rel (0) target = $region29
    $region28: #{tpu_custom_call.1} parent=1 // pred_region
      _
    $region29: #{tpu_custom_call.1} parent=1 // pred_fallthru
      _
    // Predicated region
    $region30: #{tpu_custom_call.1} parent=1 // pred_check
      _
    $region31: #{tpu_custom_call.1} parent=1 // pred_check_branch
      %30 = sbr.rel (0) target = $region33
    $region32: #{tpu_custom_call.1} parent=1 // pred_region
      _
    $region33: #{tpu_custom_call.1} parent=1 // pred_fallthru
      _
    // Predicated region
    $region34: #{tpu_custom_call.1} parent=1 // pred_check
      _
    $region35: #{tpu_custom_call.1} parent=1 // pred_check_branch
      %32 = sbr.rel (0) target = $region37
    $region36: #{tpu_custom_call.1} parent=1 // pred_region
      _
    $region37: #{tpu_custom_call.1} parent=1 // pred_fallthru
      _
    %v34 = vld [vmem:[%s0] sm:$0xff]
    %v35 = vld [vmem:[%s0 + $0x8] sm:$0xff]
    %v36 = vpack.c.bf16 %v35, %v34
    %v37 = vld [vmem:[%s1] sm:$0xf]
    %v38 = vld [vmem:[%s1 + $0x4] sm:$0xf]
    %v39 = vld [vmem:[%s1 + $0x8] sm:$0xf]
    %v40 = vld [vmem:[%s1 + $0xc] sm:$0xf]
    %v41 = vld [vmem:[%s1 + $0x10] sm:$0xf]
    %v42 = vld [vmem:[%s1 + $0x14] sm:$0xf]
    %v43 = vld [vmem:[%s1 + $0x18] sm:$0xf]
    %v44 = vld [vmem:[%s2] sm:$0x1]
    %v46 = vlaneseq
    %v47 = vshrl.u32 %v46, 7
    %v48 = vsub.s32 0, %v47
    %v49 = vrot.slane %v44, %v48
    %v58 = vunpack.c.l.b16 %v37
    %v59 = vunpack.c.l.b16 %v38
    %v60 = vunpack.c.l.b16 %v39
    %v61 = vunpack.c.l.b16 %v40
    %v62 = vunpack.c.l.b16 %v41
    %v63 = vunpack.c.l.b16 %v42
    %v64 = vunpack.c.l.b16 %v43
    %v65 = vpack.c.b16 %v59, %v58
    %v66 = vpack.c.b16 %v61, %v60
    %v67 = vpack.c.b16 %v63, %v62
    %v68 = vpack.c.b16 %v64, %v64
    %vm72 = vcmask 457728
    %v74 = vsel %vm72, %v36, 0
    %vm76 = vcmask 1043456
    %v78 = vsel %vm76, %v68, 0
    %80 = vmatprep.subr.bf16.mxu0 0
    %81 = vmatpush1.bf16.msra.mxu0 %v65
    %82 = vmatprep.subr.bf16.mxu0 0
    %83 = vmatpush1.bf16.msra.mxu0 %v66
    %84 = vmatprep.subr.bf16.mxu0 0
    %85 = vmatpush1.bf16.msra.mxu0 %v67
    %86 = vmatprep.subr.bf16.mxu0 0
    %87 = vmatpush1.bf16.msra.mxu0 %v78
    %88 = vmatprep.subr.bf16.mxu0 0
    %89 = vmatpush1.bf16.msra.mxu0 0
    %90 = vmatprep.subr.bf16.mxu0 0
    %91 = vmatpush1.bf16.msra.mxu0 0
    %92 = vmatprep.subr.bf16.mxu0 0
    %93 = vmatpush1.bf16.msra.mxu0 0
    %94 = vmatprep.subr.bf16.mxu0 0
    %95 = vmatpush1.bf16.msra.mxu0 0
    %96 = vmatprep.subr.bf16.mxu0 0
    %97 = vmatpush1.bf16.msra.mxu0 0
    %98 = vmatprep.subr.bf16.mxu0 0
    %99 = vmatpush1.bf16.msra.mxu0 0
    %100 = vmatprep.subr.bf16.mxu0 0
    %101 = vmatpush1.bf16.msra.mxu0 0
    %102 = vmatprep.subr.bf16.mxu0 0
    %103 = vmatpush1.bf16.msra.mxu0 0
    %104 = vmatprep.subr.bf16.mxu0 0
    %105 = vmatpush1.bf16.msra.mxu0 0
    %106 = vmatprep.subr.bf16.mxu0 0
    %107 = vmatpush1.bf16.msra.mxu0 0
    %108 = vmatprep.subr.bf16.mxu0 0
    %109 = vmatpush1.bf16.msra.mxu0 0
    %110 = vmatprep.subr.bf16.mxu0 0
    %111 = vmatpush1.bf16.msra.mxu0 0
    %112 = vmatprep.mubr.bf16.mxu0 0
    %113 = vmatmul.mubr.bf16.gmra.mrb[0].mxu0 %v74
    %v114 = vpop.f32.mrb[0].mxu0
    %v115 = vadd.f32 %v49, %v114
    %v116 = vpop.f32.mrb[0].mxu0
    %v117 = vpop.f32.mrb[0].mxu0
    %v118 = vadd.f32 %v49, %v117
    %v119 = vpop.f32.mrb[0].mxu0
    %120 = vdwg.mxu0
    %v121 = vmax.f32 %v115, 0.0
    %v122 = vmax.f32 %v118, 0.0
    %v123 = vpack.c.bf16 %v122, %v121
    %v124 = vld [vmem:[%s3] sm:$0xf]
    %v125 = vld [vmem:[%s3 + $0x4] sm:$0xf]
    %v126 = vld [vmem:[%s3 + $0x8] sm:$0xf]
    %v127 = vld [vmem:[%s3 + $0xc] sm:$0x3]
    %v128 = vld [vmem:[%s4] sm:$0x1]
    %v130 = vlaneseq
    %v131 = vshrl.u32 %v130, 7
    %v132 = vsub.s32 0, %v131
    %v133 = vrot.slane %v128, %v132
    %v139 = vunpack.c.l.b16 %v124
    %v140 = vunpack.c.l.b16 %v125
    %v141 = vunpack.c.l.b16 %v126
    %v142 = vunpack.c.l.b16 %v127
    %v143 = vpack.c.b16 %v140, %v139
    %v144 = vpack.c.b16 %v142, %v141
    %vm146 = vcmask 228352
    %v148 = vsel %vm146, %v123, 0
    %vm150 = vcmask 1045504
    %v152 = vsel %vm150, %v144, 0
    %154 = vmatprep.subr.bf16.mxu0 0
    %155 = vmatpush1.bf16.msra.mxu0 %v143
    %156 = vmatprep.subr.bf16.mxu0 0
    %157 = vmatpush1.bf16.msra.mxu0 %v152
    %158 = vmatprep.subr.bf16.mxu0 0
    %159 = vmatpush1.bf16.msra.mxu0 0
    %160 = vmatprep.subr.bf16.mxu0 0
    %161 = vmatpush1.bf16.msra.mxu0 0
    %162 = vmatprep.subr.bf16.mxu0 0
    %163 = vmatpush1.bf16.msra.mxu0 0
    %164 = vmatprep.subr.bf16.mxu0 0
    %165 = vmatpush1.bf16.msra.mxu0 0
    %166 = vmatprep.subr.bf16.mxu0 0
    %167 = vmatpush1.bf16.msra.mxu0 0
    %168 = vmatprep.subr.bf16.mxu0 0
    %169 = vmatpush1.bf16.msra.mxu0 0
    %170 = vmatprep.subr.bf16.mxu0 0
    %171 = vmatpush1.bf16.msra.mxu0 0
    %172 = vmatprep.subr.bf16.mxu0 0
    %173 = vmatpush1.bf16.msra.mxu0 0
    %174 = vmatprep.subr.bf16.mxu0 0
    %175 = vmatpush1.bf16.msra.mxu0 0
    %176 = vmatprep.subr.bf16.mxu0 0
    %177 = vmatpush1.bf16.msra.mxu0 0
    %178 = vmatprep.subr.bf16.mxu0 0
    %179 = vmatpush1.bf16.msra.mxu0 0
    %180 = vmatprep.subr.bf16.mxu0 0
    %181 = vmatpush1.bf16.msra.mxu0 0
    %182 = vmatprep.subr.bf16.mxu0 0
    %183 = vmatpush1.bf16.msra.mxu0 0
    %184 = vmatprep.subr.bf16.mxu0 0
    %185 = vmatpush1.bf16.msra.mxu0 0
    %186 = vmatprep.mubr.bf16.mxu0 0
    %187 = vmatmul.mubr.bf16.gmra.mrb[0].mxu0 %v148
    %v188 = vpop.f32.mrb[0].mxu0
    %v189 = vadd.f32 %v133, %v188
    %v190 = vpop.f32.mrb[0].mxu0
    %v191 = vpop.f32.mrb[0].mxu0
    %v192 = vadd.f32 %v133, %v191
    %v193 = vpop.f32.mrb[0].mxu0
    %194 = vdwg.mxu0
    %v195 = vmax.f32 %v189, 0.0
    %v196 = vmax.f32 %v192, 0.0
    %v197 = vpack.c.bf16 %v196, %v195
    %v198 = vld [vmem:[%s5] sm:$0xf]
    %v199 = vld [vmem:[%s5 + $0x4] sm:$0x7]
    %v200 = vld [vmem:[%s6] sm:$0x1]
    %v202 = vlaneseq
    %v203 = vshrl.u32 %v202, 7
    %v204 = vsub.s32 0, %v203
    %v205 = vrot.slane %v200, %v204
    %v209 = vunpack.c.l.b16 %v198
    %v210 = vunpack.c.l.b16 %v199
    %v211 = vpack.c.b16 %v210, %v209
    %vm212 = vcmask 113664
    %v214 = vsel %vm212, %v197, 0
    %vm216 = vcmask 1046528
    %v218 = vsel %vm216, %v211, 0
    %220 = vmatprep.subr.bf16.mxu0 0
    %221 = vmatpush1.bf16.msra.mxu0 %v218
    %222 = vmatprep.subr.bf16.mxu0 0
    %223 = vmatpush1.bf16.msra.mxu0 0
    %224 = vmatprep.subr.bf16.mxu0 0
    %225 = vmatpush1.bf16.msra.mxu0 0
    %226 = vmatprep.subr.bf16.mxu0 0
    %227 = vmatpush1.bf16.msra.mxu0 0
    %228 = vmatprep.subr.bf16.mxu0 0
    %229 = vmatpush1.bf16.msra.mxu0 0
    %230 = vmatprep.subr.bf16.mxu0 0
    %231 = vmatpush1.bf16.msra.mxu0 0
    %232 = vmatprep.subr.bf16.mxu0 0
    %233 = vmatpush1.bf16.msra.mxu0 0
    %234 = vmatprep.subr.bf16.mxu0 0
    %235 = vmatpush1.bf16.msra.mxu0 0
    %236 = vmatprep.subr.bf16.mxu0 0
    %237 = vmatpush1.bf16.msra.mxu0 0
    %238 = vmatprep.subr.bf16.mxu0 0
    %239 = vmatpush1.bf16.msra.mxu0 0
    %240 = vmatprep.subr.bf16.mxu0 0
    %241 = vmatpush1.bf16.msra.mxu0 0
    %242 = vmatprep.subr.bf16.mxu0 0
    %243 = vmatpush1.bf16.msra.mxu0 0
    %244 = vmatprep.subr.bf16.mxu0 0
    %245 = vmatpush1.bf16.msra.mxu0 0
    %246 = vmatprep.subr.bf16.mxu0 0
    %247 = vmatpush1.bf16.msra.mxu0 0
    %248 = vmatprep.subr.bf16.mxu0 0
    %249 = vmatpush1.bf16.msra.mxu0 0
    %250 = vmatprep.subr.bf16.mxu0 0
    %251 = vmatpush1.bf16.msra.mxu0 0
    %252 = vmatprep.mubr.bf16.mxu0 0
    %253 = vmatmul.mubr.bf16.gmra.mrb[0].mxu0 %v214
    %v254 = vpop.f32.mrb[0].mxu0
    %v255 = vadd.f32 %v205, %v254
    %v256 = vpop.f32.mrb[0].mxu0
    %v257 = vpop.f32.mrb[0].mxu0
    %v258 = vadd.f32 %v205, %v257
    %v259 = vpop.f32.mrb[0].mxu0
    %260 = vdwg.mxu0
    %v261 = vmax.f32 %v255, 0.0
    %v262 = vmax.f32 %v258, 0.0
    %v263 = vpack.c.bf16 %v262, %v261
    %v264 = vld [vmem:[%s7] sm:$0xf]
    %v265 = vld [vmem:[%s7 + $0x4] sm:$0xf]
    %v266 = vld [vmem:[%s7 + $0x8] sm:$0xf]
    %v267 = vld [vmem:[%s7 + $0xc] sm:$0x3]
    %v268 = vld [vmem:[%s8] sm:$0x1]
    %v270 = vlaneseq
    %v271 = vshrl.u32 %v270, 7
    %v272 = vsub.s32 0, %v271
    %v273 = vrot.slane %v268, %v272
    %v279 = vunpack.c.l.b16 %v264
    %v280 = vunpack.c.l.b16 %v265
    %v281 = vunpack.c.l.b16 %v266
    %v282 = vunpack.c.l.b16 %v267
    %v283 = vpack.c.b16 %v280, %v279
    %v284 = vpack.c.b16 %v282, %v281
    %v287 = vsel %vm146, %v263, 0
    %v290 = vsel %vm150, %v284, 0
    %292 = vmatprep.subr.bf16.mxu0 0
    %293 = vmatpush1.bf16.msra.mxu0 %v283
    %294 = vmatprep.subr.bf16.mxu0 0
    %295 = vmatpush1.bf16.msra.mxu0 %v290
    %296 = vmatprep.subr.bf16.mxu0 0
    %297 = vmatpush1.bf16.msra.mxu0 0
    %298 = vmatprep.subr.bf16.mxu0 0
    %299 = vmatpush1.bf16.msra.mxu0 0
    %300 = vmatprep.subr.bf16.mxu0 0
    %301 = vmatpush1.bf16.msra.mxu0 0
    %302 = vmatprep.subr.bf16.mxu0 0
    %303 = vmatpush1.bf16.msra.mxu0 0
    %304 = vmatprep.subr.bf16.mxu0 0
    %305 = vmatpush1.bf16.msra.mxu0 0
    %306 = vmatprep.subr.bf16.mxu0 0
    %307 = vmatpush1.bf16.msra.mxu0 0
    %308 = vmatprep.subr.bf16.mxu0 0
    %309 = vmatpush1.bf16.msra.mxu0 0
    %310 = vmatprep.subr.bf16.mxu0 0
    %311 = vmatpush1.bf16.msra.mxu0 0
    %312 = vmatprep.subr.bf16.mxu0 0
    %313 = vmatpush1.bf16.msra.mxu0 0
    %314 = vmatprep.subr.bf16.mxu0 0
    %315 = vmatpush1.bf16.msra.mxu0 0
    %316 = vmatprep.subr.bf16.mxu0 0
    %317 = vmatpush1.bf16.msra.mxu0 0
    %318 = vmatprep.subr.bf16.mxu0 0
    %319 = vmatpush1.bf16.msra.mxu0 0
    %320 = vmatprep.subr.bf16.mxu0 0
    %321 = vmatpush1.bf16.msra.mxu0 0
    %322 = vmatprep.subr.bf16.mxu0 0
    %323 = vmatpush1.bf16.msra.mxu0 0
    %324 = vmatprep.mubr.bf16.mxu0 0
    %325 = vmatmul.mubr.bf16.gmra.mrb[0].mxu0 %v287
    %v326 = vpop.f32.mrb[0].mxu0
    %v327 = vadd.f32 %v273, %v326
    %v328 = vpop.f32.mrb[0].mxu0
    %v329 = vpop.f32.mrb[0].mxu0
    %v330 = vadd.f32 %v273, %v329
    %v331 = vpop.f32.mrb[0].mxu0
    %332 = vdwg.mxu0
    %v333 = vmax.f32 %v327, 0.0
    %v334 = vmax.f32 %v330, 0.0
    %335 = vst.msk [vmem:[#allocation2] sm:$0xff] %vm72, %v333
    %336 = vst.msk [vmem:[#allocation2 + $0x8] sm:$0xff] %vm72, %v334
    // Predicated region
    $region38: #{tpu_custom_call.1} parent=1 // pred_check
      _
    $region39: #{tpu_custom_call.1} parent=1 // pred_check_branch
      %338 = sbr.rel (0) target = $region41
    $region40: #{tpu_custom_call.1} parent=1 // pred_region
      %s340 = ssub.s32 256, 256
      %341 = vsyncadd [#allocation3], %s340
      %s342 = sshll.u32 [#allocation2], 4
      %s343 = int_to_ptr.vmem [resolvable:$true] %s342
      %348 = dma.vmem_to_hbm [thread:$0]  %s343, 256, %s9, [#allocation3], 128, 128, 8
    $region41: #{tpu_custom_call.1} parent=1 // pred_fallthru
      _
    // Predicated region
    $region42: #{tpu_custom_call.1} parent=1 // pred_check
      _
    $region43: #{tpu_custom_call.1} parent=1 // pred_check_branch
      %350 = sbr.rel (0) target = $region45
    $region44: #{tpu_custom_call.1} parent=1 // pred_region
      %351 = dma.done [#allocation3], 256
    $region45: #{tpu_custom_call.1} parent=1 // pred_fallthru
      _
    %352 = vsyncpa [#allocation3], 1

</llo_original>
